<compile_context>
chip_gen: v6e
topology: v6e:2x2x1
jax: 0.10.0
libtpu: 0.0.40
codegen_flags: <defaults>
</compile_context>

<pallas_src>
import functools

import numpy as np
import jax
import jax.numpy as jnp
from jax.experimental import pallas as pl
from jax.experimental.pallas import tpu as pltpu


ROWS_PER_STEP = 16  # rows gathered per grid step (multiple of 8 for sublane alignment)


def _gather_kernel(idx_ref, *refs):
    """refs = (row_0, ..., row_{R-1}, out_ref).

    Each row_r is the (1, 1, D) embedding row that the BlockSpec index_map
    already DMA'd from HBM using the scalar-prefetched global index; the body
    just lays the R rows down as one (R, D) output block.
    """
    del idx_ref  # indices are consumed by the index_maps, not the body
    out_ref = refs[-1]
    row_refs = refs[:-1]
    d = out_ref.shape[-1]
    for r, row in enumerate(row_refs):           # static, unrolls (R rows)
        out_ref[r:r + 1, :] = row[...].reshape(1, d)


def features_embedding(x, table, offsets, *, rows_per_step=ROWS_PER_STEP):
    """x: (B, F) int; table: (V, D); offsets: (F,) int -> (B, F, D)."""
    B, F = x.shape
    V, D = table.shape
    R = int(rows_per_step)
    assert R % 8 == 0, "rows_per_step must be a multiple of 8 (sublane alignment)"

    # Precompute global ids in the wrapper (plain XLA, one tiny elementwise add).
    gidx = (x.astype(jnp.int32) + offsets.astype(jnp.int32)[None, :]).reshape(B * F)

    # Pad the flattened row count to a multiple of R; pad rows gather row 0
    # and are sliced off after the call.
    n = B * F
    n_pad = ((n + R - 1) // R) * R
    if n_pad != n:
        gidx = jnp.concatenate([gidx, jnp.zeros((n_pad - n,), jnp.int32)])

    # Row axis leads; last two dims (1, D) are full extents for every block.
    table_r = table.reshape(V, 1, D)

    def row_map(r, i, idx_ref):
        # Block size along the row axis is 1, so block index == global row index.
        return (idx_ref[i * R + r], 0, 0)

    in_specs = [
        pl.BlockSpec((1, 1, D), functools.partial(row_map, r)) for r in range(R)
    ]

    grid_spec = pltpu.PrefetchScalarGridSpec(
        num_scalar_prefetch=1,
        grid=(n_pad // R,),
        in_specs=in_specs,
        out_specs=pl.BlockSpec((R, D), lambda i, idx_ref: (i, 0)),
    )

    out_flat = pl.pallas_call(
        _gather_kernel,
        out_shape=jax.ShapeDtypeStruct((n_pad, D), table.dtype),
        grid_spec=grid_spec,
        compiler_params=pltpu.CompilerParams(
            dimension_semantics=("parallel",),
        ),
    )(gidx, *([table_r] * R))

    return out_flat[:n].reshape(B, F, D)


if __name__ == "__main__":
    key = jax.random.PRNGKey(0)

    # Module config (small, consistent with FeaturesEmbedding.__init__)
    field_dims = (3, 4, 5, 6)          # sum = 18 vocab entries
    embed_dim = 16
    batch = 8
    num_fields = len(field_dims)
    vocab = int(sum(field_dims))

    offsets_np = np.array((0, *np.cumsum(field_dims)[:-1]), dtype=np.int32)
    offsets = jnp.asarray(offsets_np)

    # Deterministic parameters: xavier_uniform-style table init (done host-side;
    # matches nn.init.xavier_uniform_ bounds sqrt(6/(fan_in+fan_out))).
    k_emb, k_x = jax.random.split(key)
    bound = float(np.sqrt(6.0 / (vocab + embed_dim)))
    table = jax.random.uniform(
        k_emb, (vocab, embed_dim), jnp.float32, minval=-bound, maxval=bound
    )

    # Field-local indices in [0, field_dims[f])
    cols = []
    for fd in field_dims:
        k_x, sub = jax.random.split(k_x)
        cols.append(jax.random.randint(sub, (batch, 1), 0, fd, dtype=jnp.int32))
    x = jnp.concatenate(cols, axis=1)   # (batch, num_fields)

    out = features_embedding(x, table, offsets)
    out = jax.block_until_ready(out)

    # Pure-JAX reference (same semantics as the PyTorch forward)
    gidx = x + offsets[None, :]
    ref = table[gidx]                                   # (batch, num_fields, embed_dim)
    assert out.shape == (batch, num_fields, embed_dim)
    np.testing.assert_allclose(np.asarray(out), np.asarray(ref), rtol=1e-6, atol=1e-6)

    print("KERNEL_OK")
</pallas_src>

<mosaic_0001>
module attributes {stable_mosaic.version = 11 : i64} {
  func.func @_gather_kernel(%arg0: i32, %arg1: memref<32xi32, #tpu.memory_space<smem>>, %arg2: memref<1x1x16xf32, #tpu.memory_space<vmem>>, %arg3: memref<1x1x16xf32, #tpu.memory_space<vmem>>, %arg4: memref<1x1x16xf32, #tpu.memory_space<vmem>>, %arg5: memref<1x1x16xf32, #tpu.memory_space<vmem>>, %arg6: memref<1x1x16xf32, #tpu.memory_space<vmem>>, %arg7: memref<1x1x16xf32, #tpu.memory_space<vmem>>, %arg8: memref<1x1x16xf32, #tpu.memory_space<vmem>>, %arg9: memref<1x1x16xf32, #tpu.memory_space<vmem>>, %arg10: memref<1x1x16xf32, #tpu.memory_space<vmem>>, %arg11: memref<1x1x16xf32, #tpu.memory_space<vmem>>, %arg12: memref<1x1x16xf32, #tpu.memory_space<vmem>>, %arg13: memref<1x1x16xf32, #tpu.memory_space<vmem>>, %arg14: memref<1x1x16xf32, #tpu.memory_space<vmem>>, %arg15: memref<1x1x16xf32, #tpu.memory_space<vmem>>, %arg16: memref<1x1x16xf32, #tpu.memory_space<vmem>>, %arg17: memref<1x1x16xf32, #tpu.memory_space<vmem>>, %arg18: memref<16x16xf32, #tpu.memory_space<vmem>>) attributes {dimension_semantics = [#tpu.dimension_semantics<parallel>], iteration_bounds = array<i64: 2>, scalar_prefetch = 1 : i64, scratch_operands = 0 : i64, tpu.core_type = #tpu.core_type<tc>, window_params = [{transform_indices = @transform_0, window_bounds = array<i64: 1, 1, 16>}, {transform_indices = @transform_1, window_bounds = array<i64: 1, 1, 16>}, {transform_indices = @transform_2, window_bounds = array<i64: 1, 1, 16>}, {transform_indices = @transform_3, window_bounds = array<i64: 1, 1, 16>}, {transform_indices = @transform_4, window_bounds = array<i64: 1, 1, 16>}, {transform_indices = @transform_5, window_bounds = array<i64: 1, 1, 16>}, {transform_indices = @transform_6, window_bounds = array<i64: 1, 1, 16>}, {transform_indices = @transform_7, window_bounds = array<i64: 1, 1, 16>}, {transform_indices = @transform_8, window_bounds = array<i64: 1, 1, 16>}, {transform_indices = @transform_9, window_bounds = array<i64: 1, 1, 16>}, {transform_indices = @transform_10, window_bounds = array<i64: 1, 1, 16>}, {transform_indices = @transform_11, window_bounds = array<i64: 1, 1, 16>}, {transform_indices = @transform_12, window_bounds = array<i64: 1, 1, 16>}, {transform_indices = @transform_13, window_bounds = array<i64: 1, 1, 16>}, {transform_indices = @transform_14, window_bounds = array<i64: 1, 1, 16>}, {transform_indices = @transform_15, window_bounds = array<i64: 1, 1, 16>}, {transform_indices = @transform_16, window_bounds = array<i64: 16, 16>}]} {
    %c0 = arith.constant 0 : index
    %c0_0 = arith.constant 0 : index
    %c0_1 = arith.constant 0 : index
    %0 = vector.load %arg2[%c0, %c0_0, %c0_1] : memref<1x1x16xf32, #tpu.memory_space<vmem>>, vector<1x1x16xf32>
    %1 = vector.shape_cast %0 : vector<1x1x16xf32> to vector<1x16xf32>
    %c0_2 = arith.constant 0 : index
    %c0_3 = arith.constant 0 : index
    %2 = vector.load %arg18[%c0_2, %c0_3] : memref<16x16xf32, #tpu.memory_space<vmem>>, vector<1x16xf32>
    tpu.vector_store %arg18[%c0_2, %c0_3], %1 {strides = array<i32>} : memref<16x16xf32, #tpu.memory_space<vmem>>, vector<1x16xf32>,
    %c0_4 = arith.constant 0 : index
    %c0_5 = arith.constant 0 : index
    %c0_6 = arith.constant 0 : index
    %3 = vector.load %arg3[%c0_4, %c0_5, %c0_6] : memref<1x1x16xf32, #tpu.memory_space<vmem>>, vector<1x1x16xf32>
    %4 = vector.shape_cast %3 : vector<1x1x16xf32> to vector<1x16xf32>
    %c1 = arith.constant 1 : index
    %c0_7 = arith.constant 0 : index
    %5 = vector.load %arg18[%c1, %c0_7] : memref<16x16xf32, #tpu.memory_space<vmem>>, vector<1x16xf32>
    tpu.vector_store %arg18[%c1, %c0_7], %4 {strides = array<i32>} : memref<16x16xf32, #tpu.memory_space<vmem>>, vector<1x16xf32>,
    %c0_8 = arith.constant 0 : index
    %c0_9 = arith.constant 0 : index
    %c0_10 = arith.constant 0 : index
    %6 = vector.load %arg4[%c0_8, %c0_9, %c0_10] : memref<1x1x16xf32, #tpu.memory_space<vmem>>, vector<1x1x16xf32>
    %7 = vector.shape_cast %6 : vector<1x1x16xf32> to vector<1x16xf32>
    %c2 = arith.constant 2 : index
    %c0_11 = arith.constant 0 : index
    %8 = vector.load %arg18[%c2, %c0_11] : memref<16x16xf32, #tpu.memory_space<vmem>>, vector<1x16xf32>
    tpu.vector_store %arg18[%c2, %c0_11], %7 {strides = array<i32>} : memref<16x16xf32, #tpu.memory_space<vmem>>, vector<1x16xf32>,
    %c0_12 = arith.constant 0 : index
    %c0_13 = arith.constant 0 : index
    %c0_14 = arith.constant 0 : index
    %9 = vector.load %arg5[%c0_12, %c0_13, %c0_14] : memref<1x1x16xf32, #tpu.memory_space<vmem>>, vector<1x1x16xf32>
    %10 = vector.shape_cast %9 : vector<1x1x16xf32> to vector<1x16xf32>
    %c3 = arith.constant 3 : index
    %c0_15 = arith.constant 0 : index
    %11 = vector.load %arg18[%c3, %c0_15] : memref<16x16xf32, #tpu.memory_space<vmem>>, vector<1x16xf32>
    tpu.vector_store %arg18[%c3, %c0_15], %10 {strides = array<i32>} : memref<16x16xf32, #tpu.memory_space<vmem>>, vector<1x16xf32>,
    %c0_16 = arith.constant 0 : index
    %c0_17 = arith.constant 0 : index
    %c0_18 = arith.constant 0 : index
    %12 = vector.load %arg6[%c0_16, %c0_17, %c0_18] : memref<1x1x16xf32, #tpu.memory_space<vmem>>, vector<1x1x16xf32>
    %13 = vector.shape_cast %12 : vector<1x1x16xf32> to vector<1x16xf32>
    %c4 = arith.constant 4 : index
    %c0_19 = arith.constant 0 : index
    %14 = vector.load %arg18[%c4, %c0_19] : memref<16x16xf32, #tpu.memory_space<vmem>>, vector<1x16xf32>
    tpu.vector_store %arg18[%c4, %c0_19], %13 {strides = array<i32>} : memref<16x16xf32, #tpu.memory_space<vmem>>, vector<1x16xf32>,
    %c0_20 = arith.constant 0 : index
    %c0_21 = arith.constant 0 : index
    %c0_22 = arith.constant 0 : index
    %15 = vector.load %arg7[%c0_20, %c0_21, %c0_22] : memref<1x1x16xf32, #tpu.memory_space<vmem>>, vector<1x1x16xf32>
    %16 = vector.shape_cast %15 : vector<1x1x16xf32> to vector<1x16xf32>
    %c5 = arith.constant 5 : index
    %c0_23 = arith.constant 0 : index
    %17 = vector.load %arg18[%c5, %c0_23] : memref<16x16xf32, #tpu.memory_space<vmem>>, vector<1x16xf32>
    tpu.vector_store %arg18[%c5, %c0_23], %16 {strides = array<i32>} : memref<16x16xf32, #tpu.memory_space<vmem>>, vector<1x16xf32>,
    %c0_24 = arith.constant 0 : index
    %c0_25 = arith.constant 0 : index
    %c0_26 = arith.constant 0 : index
    %18 = vector.load %arg8[%c0_24, %c0_25, %c0_26] : memref<1x1x16xf32, #tpu.memory_space<vmem>>, vector<1x1x16xf32>
    %19 = vector.shape_cast %18 : vector<1x1x16xf32> to vector<1x16xf32>
    %c6 = arith.constant 6 : index
    %c0_27 = arith.constant 0 : index
    %20 = vector.load %arg18[%c6, %c0_27] : memref<16x16xf32, #tpu.memory_space<vmem>>, vector<1x16xf32>
    tpu.vector_store %arg18[%c6, %c0_27], %19 {strides = array<i32>} : memref<16x16xf32, #tpu.memory_space<vmem>>, vector<1x16xf32>,
    %c0_28 = arith.constant 0 : index
    %c0_29 = arith.constant 0 : index
    %c0_30 = arith.constant 0 : index
    %21 = vector.load %arg9[%c0_28, %c0_29, %c0_30] : memref<1x1x16xf32, #tpu.memory_space<vmem>>, vector<1x1x16xf32>
    %22 = vector.shape_cast %21 : vector<1x1x16xf32> to vector<1x16xf32>
    %c7 = arith.constant 7 : index
    %c0_31 = arith.constant 0 : index
    %23 = vector.load %arg18[%c7, %c0_31] : memref<16x16xf32, #tpu.memory_space<vmem>>, vector<1x16xf32>
    tpu.vector_store %arg18[%c7, %c0_31], %22 {strides = array<i32>} : memref<16x16xf32, #tpu.memory_space<vmem>>, vector<1x16xf32>,
    %c0_32 = arith.constant 0 : index
    %c0_33 = arith.constant 0 : index
    %c0_34 = arith.constant 0 : index
    %24 = vector.load %arg10[%c0_32, %c0_33, %c0_34] : memref<1x1x16xf32, #tpu.memory_space<vmem>>, vector<1x1x16xf32>
    %25 = vector.shape_cast %24 : vector<1x1x16xf32> to vector<1x16xf32>
    %c8 = arith.constant 8 : index
    %c0_35 = arith.constant 0 : index
    %26 = vector.load %arg18[%c8, %c0_35] : memref<16x16xf32, #tpu.memory_space<vmem>>, vector<1x16xf32>
    tpu.vector_store %arg18[%c8, %c0_35], %25 {strides = array<i32>} : memref<16x16xf32, #tpu.memory_space<vmem>>, vector<1x16xf32>,
    %c0_36 = arith.constant 0 : index
    %c0_37 = arith.constant 0 : index
    %c0_38 = arith.constant 0 : index
    %27 = vector.load %arg11[%c0_36, %c0_37, %c0_38] : memref<1x1x16xf32, #tpu.memory_space<vmem>>, vector<1x1x16xf32>
    %28 = vector.shape_cast %27 : vector<1x1x16xf32> to vector<1x16xf32>
    %c9 = arith.constant 9 : index
    %c0_39 = arith.constant 0 : index
    %29 = vector.load %arg18[%c9, %c0_39] : memref<16x16xf32, #tpu.memory_space<vmem>>, vector<1x16xf32>
    tpu.vector_store %arg18[%c9, %c0_39], %28 {strides = array<i32>} : memref<16x16xf32, #tpu.memory_space<vmem>>, vector<1x16xf32>,
    %c0_40 = arith.constant 0 : index
    %c0_41 = arith.constant 0 : index
    %c0_42 = arith.constant 0 : index
    %30 = vector.load %arg12[%c0_40, %c0_41, %c0_42] : memref<1x1x16xf32, #tpu.memory_space<vmem>>, vector<1x1x16xf32>
    %31 = vector.shape_cast %30 : vector<1x1x16xf32> to vector<1x16xf32>
    %c10 = arith.constant 10 : index
    %c0_43 = arith.constant 0 : index
    %32 = vector.load %arg18[%c10, %c0_43] : memref<16x16xf32, #tpu.memory_space<vmem>>, vector<1x16xf32>
    tpu.vector_store %arg18[%c10, %c0_43], %31 {strides = array<i32>} : memref<16x16xf32, #tpu.memory_space<vmem>>, vector<1x16xf32>,
    %c0_44 = arith.constant 0 : index
    %c0_45 = arith.constant 0 : index
    %c0_46 = arith.constant 0 : index
    %33 = vector.load %arg13[%c0_44, %c0_45, %c0_46] : memref<1x1x16xf32, #tpu.memory_space<vmem>>, vector<1x1x16xf32>
    %34 = vector.shape_cast %33 : vector<1x1x16xf32> to vector<1x16xf32>
    %c11 = arith.constant 11 : index
    %c0_47 = arith.constant 0 : index
    %35 = vector.load %arg18[%c11, %c0_47] : memref<16x16xf32, #tpu.memory_space<vmem>>, vector<1x16xf32>
    tpu.vector_store %arg18[%c11, %c0_47], %34 {strides = array<i32>} : memref<16x16xf32, #tpu.memory_space<vmem>>, vector<1x16xf32>,
    %c0_48 = arith.constant 0 : index
    %c0_49 = arith.constant 0 : index
    %c0_50 = arith.constant 0 : index
    %36 = vector.load %arg14[%c0_48, %c0_49, %c0_50] : memref<1x1x16xf32, #tpu.memory_space<vmem>>, vector<1x1x16xf32>
    %37 = vector.shape_cast %36 : vector<1x1x16xf32> to vector<1x16xf32>
    %c12 = arith.constant 12 : index
    %c0_51 = arith.constant 0 : index
    %38 = vector.load %arg18[%c12, %c0_51] : memref<16x16xf32, #tpu.memory_space<vmem>>, vector<1x16xf32>
    tpu.vector_store %arg18[%c12, %c0_51], %37 {strides = array<i32>} : memref<16x16xf32, #tpu.memory_space<vmem>>, vector<1x16xf32>,
    %c0_52 = arith.constant 0 : index
    %c0_53 = arith.constant 0 : index
    %c0_54 = arith.constant 0 : index
    %39 = vector.load %arg15[%c0_52, %c0_53, %c0_54] : memref<1x1x16xf32, #tpu.memory_space<vmem>>, vector<1x1x16xf32>
    %40 = vector.shape_cast %39 : vector<1x1x16xf32> to vector<1x16xf32>
    %c13 = arith.constant 13 : index
    %c0_55 = arith.constant 0 : index
    %41 = vector.load %arg18[%c13, %c0_55] : memref<16x16xf32, #tpu.memory_space<vmem>>, vector<1x16xf32>
    tpu.vector_store %arg18[%c13, %c0_55], %40 {strides = array<i32>} : memref<16x16xf32, #tpu.memory_space<vmem>>, vector<1x16xf32>,
    %c0_56 = arith.constant 0 : index
    %c0_57 = arith.constant 0 : index
    %c0_58 = arith.constant 0 : index
    %42 = vector.load %arg16[%c0_56, %c0_57, %c0_58] : memref<1x1x16xf32, #tpu.memory_space<vmem>>, vector<1x1x16xf32>
    %43 = vector.shape_cast %42 : vector<1x1x16xf32> to vector<1x16xf32>
    %c14 = arith.constant 14 : index
    %c0_59 = arith.constant 0 : index
    %44 = vector.load %arg18[%c14, %c0_59] : memref<16x16xf32, #tpu.memory_space<vmem>>, vector<1x16xf32>
    tpu.vector_store %arg18[%c14, %c0_59], %43 {strides = array<i32>} : memref<16x16xf32, #tpu.memory_space<vmem>>, vector<1x16xf32>,
    %c0_60 = arith.constant 0 : index
    %c0_61 = arith.constant 0 : index
    %c0_62 = arith.constant 0 : index
    %45 = vector.load %arg17[%c0_60, %c0_61, %c0_62] : memref<1x1x16xf32, #tpu.memory_space<vmem>>, vector<1x1x16xf32>
    %46 = vector.shape_cast %45 : vector<1x1x16xf32> to vector<1x16xf32>
    %c15 = arith.constant 15 : index
    %c0_63 = arith.constant 0 : index
    %47 = vector.load %arg18[%c15, %c0_63] : memref<16x16xf32, #tpu.memory_space<vmem>>, vector<1x16xf32>
    tpu.vector_store %arg18[%c15, %c0_63], %46 {strides = array<i32>} : memref<16x16xf32, #tpu.memory_space<vmem>>, vector<1x16xf32>,
    return
  }
  func.func @transform_0(%arg0: i32, %arg1: memref<32xi32, #tpu.memory_space<smem>>) -> (i32, i32, i32) {
    %c16_i32 = arith.constant 16 : i32
    %0 = arith.muli %arg0, %c16_i32 : i32
    %c0_i32 = arith.constant 0 : i32
    %1 = arith.addi %0, %c0_i32 : i32
    %2 = arith.index_cast %1 : i32 to index
    %3 = memref.load %arg1[%2] : memref<32xi32, #tpu.memory_space<smem>>
    %c0_i32_0 = arith.constant 0 : i32
    %c0_i32_1 = arith.constant 0 : i32
    %c0_i32_2 = arith.constant 0 : i32
    return %3, %c0_i32_0, %c0_i32_1 : i32, i32, i32
  }
  func.func @transform_1(%arg0: i32, %arg1: memref<32xi32, #tpu.memory_space<smem>>) -> (i32, i32, i32) {
    %c16_i32 = arith.constant 16 : i32
    %0 = arith.muli %arg0, %c16_i32 : i32
    %c1_i32 = arith.constant 1 : i32
    %1 = arith.addi %0, %c1_i32 : i32
    %2 = arith.index_cast %1 : i32 to index
    %3 = memref.load %arg1[%2] : memref<32xi32, #tpu.memory_space<smem>>
    %c0_i32 = arith.constant 0 : i32
    %c0_i32_0 = arith.constant 0 : i32
    %c0_i32_1 = arith.constant 0 : i32
    return %3, %c0_i32, %c0_i32_0 : i32, i32, i32
  }
  func.func @transform_2(%arg0: i32, %arg1: memref<32xi32, #tpu.memory_space<smem>>) -> (i32, i32, i32) {
    %c16_i32 = arith.constant 16 : i32
    %0 = arith.muli %arg0, %c16_i32 : i32
    %c2_i32 = arith.constant 2 : i32
    %1 = arith.addi %0, %c2_i32 : i32
    %2 = arith.index_cast %1 : i32 to index
    %3 = memref.load %arg1[%2] : memref<32xi32, #tpu.memory_space<smem>>
    %c0_i32 = arith.constant 0 : i32
    %c0_i32_0 = arith.constant 0 : i32
    %c0_i32_1 = arith.constant 0 : i32
    return %3, %c0_i32, %c0_i32_0 : i32, i32, i32
  }
  func.func @transform_3(%arg0: i32, %arg1: memref<32xi32, #tpu.memory_space<smem>>) -> (i32, i32, i32) {
    %c16_i32 = arith.constant 16 : i32
    %0 = arith.muli %arg0, %c16_i32 : i32
    %c3_i32 = arith.constant 3 : i32
    %1 = arith.addi %0, %c3_i32 : i32
    %2 = arith.index_cast %1 : i32 to index
    %3 = memref.load %arg1[%2] : memref<32xi32, #tpu.memory_space<smem>>
    %c0_i32 = arith.constant 0 : i32
    %c0_i32_0 = arith.constant 0 : i32
    %c0_i32_1 = arith.constant 0 : i32
    return %3, %c0_i32, %c0_i32_0 : i32, i32, i32
  }
  func.func @transform_4(%arg0: i32, %arg1: memref<32xi32, #tpu.memory_space<smem>>) -> (i32, i32, i32) {
    %c16_i32 = arith.constant 16 : i32
    %0 = arith.muli %arg0, %c16_i32 : i32
    %c4_i32 = arith.constant 4 : i32
    %1 = arith.addi %0, %c4_i32 : i32
    %2 = arith.index_cast %1 : i32 to index
    %3 = memref.load %arg1[%2] : memref<32xi32, #tpu.memory_space<smem>>
    %c0_i32 = arith.constant 0 : i32
    %c0_i32_0 = arith.constant 0 : i32
    %c0_i32_1 = arith.constant 0 : i32
    return %3, %c0_i32, %c0_i32_0 : i32, i32, i32
  }
  func.func @transform_5(%arg0: i32, %arg1: memref<32xi32, #tpu.memory_space<smem>>) -> (i32, i32, i32) {
    %c16_i32 = arith.constant 16 : i32
    %0 = arith.muli %arg0, %c16_i32 : i32
    %c5_i32 = arith.constant 5 : i32
    %1 = arith.addi %0, %c5_i32 : i32
    %2 = arith.index_cast %1 : i32 to index
    %3 = memref.load %arg1[%2] : memref<32xi32, #tpu.memory_space<smem>>
    %c0_i32 = arith.constant 0 : i32
    %c0_i32_0 = arith.constant 0 : i32
    %c0_i32_1 = arith.constant 0 : i32
    return %3, %c0_i32, %c0_i32_0 : i32, i32, i32
  }
  func.func @transform_6(%arg0: i32, %arg1: memref<32xi32, #tpu.memory_space<smem>>) -> (i32, i32, i32) {
    %c16_i32 = arith.constant 16 : i32
    %0 = arith.muli %arg0, %c16_i32 : i32
    %c6_i32 = arith.constant 6 : i32
    %1 = arith.addi %0, %c6_i32 : i32
    %2 = arith.index_cast %1 : i32 to index
    %3 = memref.load %arg1[%2] : memref<32xi32, #tpu.memory_space<smem>>
    %c0_i32 = arith.constant 0 : i32
    %c0_i32_0 = arith.constant 0 : i32
    %c0_i32_1 = arith.constant 0 : i32
    return %3, %c0_i32, %c0_i32_0 : i32, i32, i32
  }
  func.func @transform_7(%arg0: i32, %arg1: memref<32xi32, #tpu.memory_space<smem>>) -> (i32, i32, i32) {
    %c16_i32 = arith.constant 16 : i32
    %0 = arith.muli %arg0, %c16_i32 : i32
    %c7_i32 = arith.constant 7 : i32
    %1 = arith.addi %0, %c7_i32 : i32
    %2 = arith.index_cast %1 : i32 to index
    %3 = memref.load %arg1[%2] : memref<32xi32, #tpu.memory_space<smem>>
    %c0_i32 = arith.constant 0 : i32
    %c0_i32_0 = arith.constant 0 : i32
    %c0_i32_1 = arith.constant 0 : i32
    return %3, %c0_i32, %c0_i32_0 : i32, i32, i32
  }
  func.func @transform_8(%arg0: i32, %arg1: memref<32xi32, #tpu.memory_space<smem>>) -> (i32, i32, i32) {
    %c16_i32 = arith.constant 16 : i32
    %0 = arith.muli %arg0, %c16_i32 : i32
    %c8_i32 = arith.constant 8 : i32
    %1 = arith.addi %0, %c8_i32 : i32
    %2 = arith.index_cast %1 : i32 to index
    %3 = memref.load %arg1[%2] : memref<32xi32, #tpu.memory_space<smem>>
    %c0_i32 = arith.constant 0 : i32
    %c0_i32_0 = arith.constant 0 : i32
    %c0_i32_1 = arith.constant 0 : i32
    return %3, %c0_i32, %c0_i32_0 : i32, i32, i32
  }
  func.func @transform_9(%arg0: i32, %arg1: memref<32xi32, #tpu.memory_space<smem>>) -> (i32, i32, i32) {
    %c16_i32 = arith.constant 16 : i32
    %0 = arith.muli %arg0, %c16_i32 : i32
    %c9_i32 = arith.constant 9 : i32
    %1 = arith.addi %0, %c9_i32 : i32
    %2 = arith.index_cast %1 : i32 to index
    %3 = memref.load %arg1[%2] : memref<32xi32, #tpu.memory_space<smem>>
    %c0_i32 = arith.constant 0 : i32
    %c0_i32_0 = arith.constant 0 : i32
    %c0_i32_1 = arith.constant 0 : i32
    return %3, %c0_i32, %c0_i32_0 : i32, i32, i32
  }
  func.func @transform_10(%arg0: i32, %arg1: memref<32xi32, #tpu.memory_space<smem>>) -> (i32, i32, i32) {
    %c16_i32 = arith.constant 16 : i32
    %0 = arith.muli %arg0, %c16_i32 : i32
    %c10_i32 = arith.constant 10 : i32
    %1 = arith.addi %0, %c10_i32 : i32
    %2 = arith.index_cast %1 : i32 to index
    %3 = memref.load %arg1[%2] : memref<32xi32, #tpu.memory_space<smem>>
    %c0_i32 = arith.constant 0 : i32
    %c0_i32_0 = arith.constant 0 : i32
    %c0_i32_1 = arith.constant 0 : i32
    return %3, %c0_i32, %c0_i32_0 : i32, i32, i32
  }
  func.func @transform_11(%arg0: i32, %arg1: memref<32xi32, #tpu.memory_space<smem>>) -> (i32, i32, i32) {
    %c16_i32 = arith.constant 16 : i32
    %0 = arith.muli %arg0, %c16_i32 : i32
    %c11_i32 = arith.constant 11 : i32
    %1 = arith.addi %0, %c11_i32 : i32
    %2 = arith.index_cast %1 : i32 to index
    %3 = memref.load %arg1[%2] : memref<32xi32, #tpu.memory_space<smem>>
    %c0_i32 = arith.constant 0 : i32
    %c0_i32_0 = arith.constant 0 : i32
    %c0_i32_1 = arith.constant 0 : i32
    return %3, %c0_i32, %c0_i32_0 : i32, i32, i32
  }
  func.func @transform_12(%arg0: i32, %arg1: memref<32xi32, #tpu.memory_space<smem>>) -> (i32, i32, i32) {
    %c16_i32 = arith.constant 16 : i32
    %0 = arith.muli %arg0, %c16_i32 : i32
    %c12_i32 = arith.constant 12 : i32
    %1 = arith.addi %0, %c12_i32 : i32
    %2 = arith.index_cast %1 : i32 to index
    %3 = memref.load %arg1[%2] : memref<32xi32, #tpu.memory_space<smem>>
    %c0_i32 = arith.constant 0 : i32
    %c0_i32_0 = arith.constant 0 : i32
    %c0_i32_1 = arith.constant 0 : i32
    return %3, %c0_i32, %c0_i32_0 : i32, i32, i32
  }
  func.func @transform_13(%arg0: i32, %arg1: memref<32xi32, #tpu.memory_space<smem>>) -> (i32, i32, i32) {
    %c16_i32 = arith.constant 16 : i32
    %0 = arith.muli %arg0, %c16_i32 : i32
    %c13_i32 = arith.constant 13 : i32
    %1 = arith.addi %0, %c13_i32 : i32
    %2 = arith.index_cast %1 : i32 to index
    %3 = memref.load %arg1[%2] : memref<32xi32, #tpu.memory_space<smem>>
    %c0_i32 = arith.constant 0 : i32
    %c0_i32_0 = arith.constant 0 : i32
    %c0_i32_1 = arith.constant 0 : i32
    return %3, %c0_i32, %c0_i32_0 : i32, i32, i32
  }
  func.func @transform_14(%arg0: i32, %arg1: memref<32xi32, #tpu.memory_space<smem>>) -> (i32, i32, i32) {
    %c16_i32 = arith.constant 16 : i32
    %0 = arith.muli %arg0, %c16_i32 : i32
    %c14_i32 = arith.constant 14 : i32
    %1 = arith.addi %0, %c14_i32 : i32
    %2 = arith.index_cast %1 : i32 to index
    %3 = memref.load %arg1[%2] : memref<32xi32, #tpu.memory_space<smem>>
    %c0_i32 = arith.constant 0 : i32
    %c0_i32_0 = arith.constant 0 : i32
    %c0_i32_1 = arith.constant 0 : i32
    return %3, %c0_i32, %c0_i32_0 : i32, i32, i32
  }
  func.func @transform_15(%arg0: i32, %arg1: memref<32xi32, #tpu.memory_space<smem>>) -> (i32, i32, i32) {
    %c16_i32 = arith.constant 16 : i32
    %0 = arith.muli %arg0, %c16_i32 : i32
    %c15_i32 = arith.constant 15 : i32
    %1 = arith.addi %0, %c15_i32 : i32
    %2 = arith.index_cast %1 : i32 to index
    %3 = memref.load %arg1[%2] : memref<32xi32, #tpu.memory_space<smem>>
    %c0_i32 = arith.constant 0 : i32
    %c0_i32_0 = arith.constant 0 : i32
    %c0_i32_1 = arith.constant 0 : i32
    return %3, %c0_i32, %c0_i32_0 : i32, i32, i32
  }
  func.func @transform_16(%arg0: i32, %arg1: memref<32xi32, #tpu.memory_space<smem>>) -> (i32, i32) {
    %c0_i32 = arith.constant 0 : i32
    %c0_i32_0 = arith.constant 0 : i32
    return %arg0, %c0_i32 : i32, i32
  }
}

</mosaic_0001>

<llo_original>
// kernel: tpu_custom_call.1
$region0: #{tpu_custom_call.1}
  #allocation0 [shape = 'u32[]', space=smem, size = 0x4, offset = 0x4, fixed_abs, tag = 'smem constant byte address 0x4 - core index']
  #allocation1 [shape = 'u32[144,128]{1,0:T(1,128)}', space=vmem, size = 0x12000, scoped, tag = 'internal scratch']
  #allocation2 [shape = 's32[1]{0}', space=sflag, size = 0x4, scoped, tag = 'scoped memory for tpu_custom_call.1']
  #allocation3 [shape = 'u8[512]{0}', space=smem, size = 0x200, scoped, tag = 'prefetched SMEM operand 0']
  %s0 = inlined_call_operand.vmem [shape: s32[32], index: 0, kind: input, shape index: {}]
  %s1 = inlined_call_operand.vmem [shape: f32[18,1,16], index: 1, kind: input, shape index: {}]
  %s2 = inlined_call_operand.vmem [shape: f32[18,1,16], index: 2, kind: input, shape index: {}]
  %s3 = inlined_call_operand.vmem [shape: f32[18,1,16], index: 3, kind: input, shape index: {}]
  %s4 = inlined_call_operand.vmem [shape: f32[18,1,16], index: 4, kind: input, shape index: {}]
  %s5 = inlined_call_operand.vmem [shape: f32[18,1,16], index: 5, kind: input, shape index: {}]
  %s6 = inlined_call_operand.vmem [shape: f32[18,1,16], index: 6, kind: input, shape index: {}]
  %s7 = inlined_call_operand.vmem [shape: f32[18,1,16], index: 7, kind: input, shape index: {}]
  %s8 = inlined_call_operand.vmem [shape: f32[18,1,16], index: 8, kind: input, shape index: {}]
  %s9 = inlined_call_operand.vmem [shape: f32[18,1,16], index: 9, kind: input, shape index: {}]
  %s10 = inlined_call_operand.vmem [shape: f32[18,1,16], index: 10, kind: input, shape index: {}]
  %s11 = inlined_call_operand.vmem [shape: f32[18,1,16], index: 11, kind: input, shape index: {}]
  %s12 = inlined_call_operand.vmem [shape: f32[18,1,16], index: 12, kind: input, shape index: {}]
  %s13 = inlined_call_operand.vmem [shape: f32[18,1,16], index: 13, kind: input, shape index: {}]
  %s14 = inlined_call_operand.vmem [shape: f32[18,1,16], index: 14, kind: input, shape index: {}]
  %s15 = inlined_call_operand.vmem [shape: f32[18,1,16], index: 15, kind: input, shape index: {}]
  %s16 = inlined_call_operand.vmem [shape: f32[18,1,16], index: 16, kind: input, shape index: {}]
  %s17 = inlined_call_operand.vmem [shape: f32[32,16], index: 17, kind: output, shape index: {}]
  %s18 = sld [smem:[#allocation0]]
  $region97: #{tpu_custom_call.1} parent=0
    _
  %s20 = ssub.s32 1, %s18
  %s21 = scalar_select 0, %s20, %s18
  %s22 = sshll.u32 %s0, 4
  %s23 = int_to_ptr.vmem [resolvable:$true] %s22
  %25 = dma.vmem_to_smem %s23, 16, [#allocation3], [#allocation2]
  %26 = dma.done [#allocation2], 16
  %27 = sfence
  loop: start=0, step=1, limit=4
  $region2: #{tpu_custom_call.1} parent=0 // loop_pre_header
    _
  $region3: #{tpu_custom_call.1} parent=0 // loop_header
    %s29 = sphi 0, %s33
    %p30 = scmp.ge.s32.totalorder %s29, 4
    %s43 = sphi 0, %s45
    %s46 = sphi 0, %s43
    %s47 = sphi 0, %s46
    %s63 = sphi 0, %s47
    %s75 = sphi 0, %s77
    %s78 = sphi 0, %s75
    %s79 = sphi 0, %s78
    %s95 = sphi 0, %s79
    %s107 = sphi 0, %s109
    %s110 = sphi 0, %s107
    %s111 = sphi 0, %s110
    %s127 = sphi 0, %s111
    %s139 = sphi 0, %s141
    %s142 = sphi 0, %s139
    %s143 = sphi 0, %s142
    %s159 = sphi 0, %s143
    %s171 = sphi 0, %s173
    %s174 = sphi 0, %s171
    %s175 = sphi 0, %s174
    %s191 = sphi 0, %s175
    %s203 = sphi 0, %s205
    %s206 = sphi 0, %s203
    %s207 = sphi 0, %s206
    %s223 = sphi 0, %s207
    %s235 = sphi 0, %s237
    %s238 = sphi 0, %s235
    %s239 = sphi 0, %s238
    %s255 = sphi 0, %s239
    %s267 = sphi 0, %s269
    %s270 = sphi 0, %s267
    %s271 = sphi 0, %s270
    %s287 = sphi 0, %s271
    %s299 = sphi 0, %s301
    %s302 = sphi 0, %s299
    %s303 = sphi 0, %s302
    %s319 = sphi 0, %s303
    %s331 = sphi 0, %s333
    %s334 = sphi 0, %s331
    %s335 = sphi 0, %s334
    %s351 = sphi 0, %s335
    %s363 = sphi 0, %s365
    %s366 = sphi 0, %s363
    %s367 = sphi 0, %s366
    %s383 = sphi 0, %s367
    %s395 = sphi 0, %s397
    %s398 = sphi 0, %s395
    %s399 = sphi 0, %s398
    %s415 = sphi 0, %s399
    %s427 = sphi 0, %s429
    %s430 = sphi 0, %s427
    %s431 = sphi 0, %s430
    %s447 = sphi 0, %s431
    %s459 = sphi 0, %s461
    %s462 = sphi 0, %s459
    %s463 = sphi 0, %s462
    %s479 = sphi 0, %s463
    %s491 = sphi 0, %s493
    %s494 = sphi 0, %s491
    %s495 = sphi 0, %s494
    %s511 = sphi 0, %s495
    %s523 = sphi 0, %s525
    %s526 = sphi 0, %s523
    %s527 = sphi 0, %s526
    %s543 = sphi 0, %s527
    %s549 = sphi 0, %s551
    %s552 = sphi 0, %s549
    %s553 = sphi 0, %s552
    %s569 = sphi 0, %s553
  $region4: #{tpu_custom_call.1} parent=0 // loop_header_branch
    %32 = sbr.rel (%p30) target = $region8
  $region5: #{tpu_custom_call.1} parent=0 // loop_body
    %s34 = ssub.s32 %s29, 1
    %s35 = ssub.s32 %s29, 2
    %s36 = sadd.s32 %s29, 1
    %s37 = smul.u32 %s29, 16
    %s38 = sld [smem:[#allocation3 + %s37]]
    %s39 = smul.u32 %s36, 16
    %s40 = sld [smem:[#allocation3 + %s39]]
    %s41 = ssub.s32 %s38, %s40
    %p42 = scmp.eq.s32.totalorder %s41, 0
    %s44 = sadd.s32 %s43, 1
    %s45 = scalar_select %p42, %s43, %s44
    %p48 = pneg %p42
    %p49 = scmp.eq.s32.totalorder %s29, 1
    %p50 = por %p48, %p49
    %p51 = scmp.ne.s32.totalorder %s43, %s46
    %p52 = scmp.eq.s32.totalorder %s29, 0
    %p53 = por %p51, %p52
    %p54 = scmp.ne.s32.totalorder %s43, %s46
    %p55 = scmp.eq.s32.totalorder %s34, 1
    %p56 = por %p54, %p55
    %p57 = scmp.ne.s32.totalorder %s46, %s47
    %p58 = scmp.eq.s32.totalorder %s34, 0
    %p59 = por %p57, %p58
    %p60 = scmp.ne.s32.totalorder %s46, %s47
    %p61 = scmp.eq.s32.totalorder %s35, 1
    %p62 = por %p60, %p61
    %p64 = scmp.ne.s32.totalorder %s47, %s63
    %p65 = scmp.eq.s32.totalorder %s35, 0
    %p66 = por %p64, %p65
    %s67 = smul.u32 %s29, 16
    %s68 = sadd.s32 %s67, 1
    %s69 = sld [smem:[#allocation3 + %s68]]
    %s70 = smul.u32 %s36, 16
    %s71 = sadd.s32 %s70, 1
    %s72 = sld [smem:[#allocation3 + %s71]]
    %s73 = ssub.s32 %s69, %s72
    %p74 = scmp.eq.s32.totalorder %s73, 0
    %s76 = sadd.s32 %s75, 1
    %s77 = scalar_select %p74, %s75, %s76
    %p80 = pneg %p74
    %p81 = scmp.eq.s32.totalorder %s29, 1
    %p82 = por %p80, %p81
    %p83 = scmp.ne.s32.totalorder %s75, %s78
    %p84 = scmp.eq.s32.totalorder %s29, 0
    %p85 = por %p83, %p84
    %p86 = scmp.ne.s32.totalorder %s75, %s78
    %p87 = scmp.eq.s32.totalorder %s34, 1
    %p88 = por %p86, %p87
    %p89 = scmp.ne.s32.totalorder %s78, %s79
    %p90 = scmp.eq.s32.totalorder %s34, 0
    %p91 = por %p89, %p90
    %p92 = scmp.ne.s32.totalorder %s78, %s79
    %p93 = scmp.eq.s32.totalorder %s35, 1
    %p94 = por %p92, %p93
    %p96 = scmp.ne.s32.totalorder %s79, %s95
    %p97 = scmp.eq.s32.totalorder %s35, 0
    %p98 = por %p96, %p97
    %s99 = smul.u32 %s29, 16
    %s100 = sadd.s32 %s99, 2
    %s101 = sld [smem:[#allocation3 + %s100]]
    %s102 = smul.u32 %s36, 16
    %s103 = sadd.s32 %s102, 2
    %s104 = sld [smem:[#allocation3 + %s103]]
    %s105 = ssub.s32 %s101, %s104
    %p106 = scmp.eq.s32.totalorder %s105, 0
    %s108 = sadd.s32 %s107, 1
    %s109 = scalar_select %p106, %s107, %s108
    %p112 = pneg %p106
    %p113 = scmp.eq.s32.totalorder %s29, 1
    %p114 = por %p112, %p113
    %p115 = scmp.ne.s32.totalorder %s107, %s110
    %p116 = scmp.eq.s32.totalorder %s29, 0
    %p117 = por %p115, %p116
    %p118 = scmp.ne.s32.totalorder %s107, %s110
    %p119 = scmp.eq.s32.totalorder %s34, 1
    %p120 = por %p118, %p119
    %p121 = scmp.ne.s32.totalorder %s110, %s111
    %p122 = scmp.eq.s32.totalorder %s34, 0
    %p123 = por %p121, %p122
    %p124 = scmp.ne.s32.totalorder %s110, %s111
    %p125 = scmp.eq.s32.totalorder %s35, 1
    %p126 = por %p124, %p125
    %p128 = scmp.ne.s32.totalorder %s111, %s127
    %p129 = scmp.eq.s32.totalorder %s35, 0
    %p130 = por %p128, %p129
    %s131 = smul.u32 %s29, 16
    %s132 = sadd.s32 %s131, 3
    %s133 = sld [smem:[#allocation3 + %s132]]
    %s134 = smul.u32 %s36, 16
    %s135 = sadd.s32 %s134, 3
    %s136 = sld [smem:[#allocation3 + %s135]]
    %s137 = ssub.s32 %s133, %s136
    %p138 = scmp.eq.s32.totalorder %s137, 0
    %s140 = sadd.s32 %s139, 1
    %s141 = scalar_select %p138, %s139, %s140
    %p144 = pneg %p138
    %p145 = scmp.eq.s32.totalorder %s29, 1
    %p146 = por %p144, %p145
    %p147 = scmp.ne.s32.totalorder %s139, %s142
    %p148 = scmp.eq.s32.totalorder %s29, 0
    %p149 = por %p147, %p148
    %p150 = scmp.ne.s32.totalorder %s139, %s142
    %p151 = scmp.eq.s32.totalorder %s34, 1
    %p152 = por %p150, %p151
    %p153 = scmp.ne.s32.totalorder %s142, %s143
    %p154 = scmp.eq.s32.totalorder %s34, 0
    %p155 = por %p153, %p154
    %p156 = scmp.ne.s32.totalorder %s142, %s143
    %p157 = scmp.eq.s32.totalorder %s35, 1
    %p158 = por %p156, %p157
    %p160 = scmp.ne.s32.totalorder %s143, %s159
    %p161 = scmp.eq.s32.totalorder %s35, 0
    %p162 = por %p160, %p161
    %s163 = smul.u32 %s29, 16
    %s164 = sadd.s32 %s163, 4
    %s165 = sld [smem:[#allocation3 + %s164]]
    %s166 = smul.u32 %s36, 16
    %s167 = sadd.s32 %s166, 4
    %s168 = sld [smem:[#allocation3 + %s167]]
    %s169 = ssub.s32 %s165, %s168
    %p170 = scmp.eq.s32.totalorder %s169, 0
    %s172 = sadd.s32 %s171, 1
    %s173 = scalar_select %p170, %s171, %s172
    %p176 = pneg %p170
    %p177 = scmp.eq.s32.totalorder %s29, 1
    %p178 = por %p176, %p177
    %p179 = scmp.ne.s32.totalorder %s171, %s174
    %p180 = scmp.eq.s32.totalorder %s29, 0
    %p181 = por %p179, %p180
    %p182 = scmp.ne.s32.totalorder %s171, %s174
    %p183 = scmp.eq.s32.totalorder %s34, 1
    %p184 = por %p182, %p183
    %p185 = scmp.ne.s32.totalorder %s174, %s175
    %p186 = scmp.eq.s32.totalorder %s34, 0
    %p187 = por %p185, %p186
    %p188 = scmp.ne.s32.totalorder %s174, %s175
    %p189 = scmp.eq.s32.totalorder %s35, 1
    %p190 = por %p188, %p189
    %p192 = scmp.ne.s32.totalorder %s175, %s191
    %p193 = scmp.eq.s32.totalorder %s35, 0
    %p194 = por %p192, %p193
    %s195 = smul.u32 %s29, 16
    %s196 = sadd.s32 %s195, 5
    %s197 = sld [smem:[#allocation3 + %s196]]
    %s198 = smul.u32 %s36, 16
    %s199 = sadd.s32 %s198, 5
    %s200 = sld [smem:[#allocation3 + %s199]]
    %s201 = ssub.s32 %s197, %s200
    %p202 = scmp.eq.s32.totalorder %s201, 0
    %s204 = sadd.s32 %s203, 1
    %s205 = scalar_select %p202, %s203, %s204
    %p208 = pneg %p202
    %p209 = scmp.eq.s32.totalorder %s29, 1
    %p210 = por %p208, %p209
    %p211 = scmp.ne.s32.totalorder %s203, %s206
    %p212 = scmp.eq.s32.totalorder %s29, 0
    %p213 = por %p211, %p212
    %p214 = scmp.ne.s32.totalorder %s203, %s206
    %p215 = scmp.eq.s32.totalorder %s34, 1
    %p216 = por %p214, %p215
    %p217 = scmp.ne.s32.totalorder %s206, %s207
    %p218 = scmp.eq.s32.totalorder %s34, 0
    %p219 = por %p217, %p218
    %p220 = scmp.ne.s32.totalorder %s206, %s207
    %p221 = scmp.eq.s32.totalorder %s35, 1
    %p222 = por %p220, %p221
    %p224 = scmp.ne.s32.totalorder %s207, %s223
    %p225 = scmp.eq.s32.totalorder %s35, 0
    %p226 = por %p224, %p225
    %s227 = smul.u32 %s29, 16
    %s228 = sadd.s32 %s227, 6
    %s229 = sld [smem:[#allocation3 + %s228]]
    %s230 = smul.u32 %s36, 16
    %s231 = sadd.s32 %s230, 6
    %s232 = sld [smem:[#allocation3 + %s231]]
    %s233 = ssub.s32 %s229, %s232
    %p234 = scmp.eq.s32.totalorder %s233, 0
    %s236 = sadd.s32 %s235, 1
    %s237 = scalar_select %p234, %s235, %s236
    %p240 = pneg %p234
    %p241 = scmp.eq.s32.totalorder %s29, 1
    %p242 = por %p240, %p241
    %p243 = scmp.ne.s32.totalorder %s235, %s238
    %p244 = scmp.eq.s32.totalorder %s29, 0
    %p245 = por %p243, %p244
    %p246 = scmp.ne.s32.totalorder %s235, %s238
    %p247 = scmp.eq.s32.totalorder %s34, 1
    %p248 = por %p246, %p247
    %p249 = scmp.ne.s32.totalorder %s238, %s239
    %p250 = scmp.eq.s32.totalorder %s34, 0
    %p251 = por %p249, %p250
    %p252 = scmp.ne.s32.totalorder %s238, %s239
    %p253 = scmp.eq.s32.totalorder %s35, 1
    %p254 = por %p252, %p253
    %p256 = scmp.ne.s32.totalorder %s239, %s255
    %p257 = scmp.eq.s32.totalorder %s35, 0
    %p258 = por %p256, %p257
    %s259 = smul.u32 %s29, 16
    %s260 = sadd.s32 %s259, 7
    %s261 = sld [smem:[#allocation3 + %s260]]
    %s262 = smul.u32 %s36, 16
    %s263 = sadd.s32 %s262, 7
    %s264 = sld [smem:[#allocation3 + %s263]]
    %s265 = ssub.s32 %s261, %s264
    %p266 = scmp.eq.s32.totalorder %s265, 0
    %s268 = sadd.s32 %s267, 1
    %s269 = scalar_select %p266, %s267, %s268
    %p272 = pneg %p266
    %p273 = scmp.eq.s32.totalorder %s29, 1
    %p274 = por %p272, %p273
    %p275 = scmp.ne.s32.totalorder %s267, %s270
    %p276 = scmp.eq.s32.totalorder %s29, 0
    %p277 = por %p275, %p276
    %p278 = scmp.ne.s32.totalorder %s267, %s270
    %p279 = scmp.eq.s32.totalorder %s34, 1
    %p280 = por %p278, %p279
    %p281 = scmp.ne.s32.totalorder %s270, %s271
    %p282 = scmp.eq.s32.totalorder %s34, 0
    %p283 = por %p281, %p282
    %p284 = scmp.ne.s32.totalorder %s270, %s271
    %p285 = scmp.eq.s32.totalorder %s35, 1
    %p286 = por %p284, %p285
    %p288 = scmp.ne.s32.totalorder %s271, %s287
    %p289 = scmp.eq.s32.totalorder %s35, 0
    %p290 = por %p288, %p289
    %s291 = smul.u32 %s29, 16
    %s292 = sadd.s32 %s291, 8
    %s293 = sld [smem:[#allocation3 + %s292]]
    %s294 = smul.u32 %s36, 16
    %s295 = sadd.s32 %s294, 8
    %s296 = sld [smem:[#allocation3 + %s295]]
    %s297 = ssub.s32 %s293, %s296
    %p298 = scmp.eq.s32.totalorder %s297, 0
    %s300 = sadd.s32 %s299, 1
    %s301 = scalar_select %p298, %s299, %s300
    %p304 = pneg %p298
    %p305 = scmp.eq.s32.totalorder %s29, 1
    %p306 = por %p304, %p305
    %p307 = scmp.ne.s32.totalorder %s299, %s302
    %p308 = scmp.eq.s32.totalorder %s29, 0
    %p309 = por %p307, %p308
    %p310 = scmp.ne.s32.totalorder %s299, %s302
    %p311 = scmp.eq.s32.totalorder %s34, 1
    %p312 = por %p310, %p311
    %p313 = scmp.ne.s32.totalorder %s302, %s303
    %p314 = scmp.eq.s32.totalorder %s34, 0
    %p315 = por %p313, %p314
    %p316 = scmp.ne.s32.totalorder %s302, %s303
    %p317 = scmp.eq.s32.totalorder %s35, 1
    %p318 = por %p316, %p317
    %p320 = scmp.ne.s32.totalorder %s303, %s319
    %p321 = scmp.eq.s32.totalorder %s35, 0
    %p322 = por %p320, %p321
    %s323 = smul.u32 %s29, 16
    %s324 = sadd.s32 %s323, 9
    %s325 = sld [smem:[#allocation3 + %s324]]
    %s326 = smul.u32 %s36, 16
    %s327 = sadd.s32 %s326, 9
    %s328 = sld [smem:[#allocation3 + %s327]]
    %s329 = ssub.s32 %s325, %s328
    %p330 = scmp.eq.s32.totalorder %s329, 0
    %s332 = sadd.s32 %s331, 1
    %s333 = scalar_select %p330, %s331, %s332
    %p336 = pneg %p330
    %p337 = scmp.eq.s32.totalorder %s29, 1
    %p338 = por %p336, %p337
    %p339 = scmp.ne.s32.totalorder %s331, %s334
    %p340 = scmp.eq.s32.totalorder %s29, 0
    %p341 = por %p339, %p340
    %p342 = scmp.ne.s32.totalorder %s331, %s334
    %p343 = scmp.eq.s32.totalorder %s34, 1
    %p344 = por %p342, %p343
    %p345 = scmp.ne.s32.totalorder %s334, %s335
    %p346 = scmp.eq.s32.totalorder %s34, 0
    %p347 = por %p345, %p346
    %p348 = scmp.ne.s32.totalorder %s334, %s335
    %p349 = scmp.eq.s32.totalorder %s35, 1
    %p350 = por %p348, %p349
    %p352 = scmp.ne.s32.totalorder %s335, %s351
    %p353 = scmp.eq.s32.totalorder %s35, 0
    %p354 = por %p352, %p353
    %s355 = smul.u32 %s29, 16
    %s356 = sadd.s32 %s355, 10
    %s357 = sld [smem:[#allocation3 + %s356]]
    %s358 = smul.u32 %s36, 16
    %s359 = sadd.s32 %s358, 10
    %s360 = sld [smem:[#allocation3 + %s359]]
    %s361 = ssub.s32 %s357, %s360
    %p362 = scmp.eq.s32.totalorder %s361, 0
    %s364 = sadd.s32 %s363, 1
    %s365 = scalar_select %p362, %s363, %s364
    %p368 = pneg %p362
    %p369 = scmp.eq.s32.totalorder %s29, 1
    %p370 = por %p368, %p369
    %p371 = scmp.ne.s32.totalorder %s363, %s366
    %p372 = scmp.eq.s32.totalorder %s29, 0
    %p373 = por %p371, %p372
    %p374 = scmp.ne.s32.totalorder %s363, %s366
    %p375 = scmp.eq.s32.totalorder %s34, 1
    %p376 = por %p374, %p375
    %p377 = scmp.ne.s32.totalorder %s366, %s367
    %p378 = scmp.eq.s32.totalorder %s34, 0
    %p379 = por %p377, %p378
    %p380 = scmp.ne.s32.totalorder %s366, %s367
    %p381 = scmp.eq.s32.totalorder %s35, 1
    %p382 = por %p380, %p381
    %p384 = scmp.ne.s32.totalorder %s367, %s383
    %p385 = scmp.eq.s32.totalorder %s35, 0
    %p386 = por %p384, %p385
    %s387 = smul.u32 %s29, 16
    %s388 = sadd.s32 %s387, 11
    %s389 = sld [smem:[#allocation3 + %s388]]
    %s390 = smul.u32 %s36, 16
    %s391 = sadd.s32 %s390, 11
    %s392 = sld [smem:[#allocation3 + %s391]]
    %s393 = ssub.s32 %s389, %s392
    %p394 = scmp.eq.s32.totalorder %s393, 0
    %s396 = sadd.s32 %s395, 1
    %s397 = scalar_select %p394, %s395, %s396
    %p400 = pneg %p394
    %p401 = scmp.eq.s32.totalorder %s29, 1
    %p402 = por %p400, %p401
    %p403 = scmp.ne.s32.totalorder %s395, %s398
    %p404 = scmp.eq.s32.totalorder %s29, 0
    %p405 = por %p403, %p404
    %p406 = scmp.ne.s32.totalorder %s395, %s398
    %p407 = scmp.eq.s32.totalorder %s34, 1
    %p408 = por %p406, %p407
    %p409 = scmp.ne.s32.totalorder %s398, %s399
    %p410 = scmp.eq.s32.totalorder %s34, 0
    %p411 = por %p409, %p410
    %p412 = scmp.ne.s32.totalorder %s398, %s399
    %p413 = scmp.eq.s32.totalorder %s35, 1
    %p414 = por %p412, %p413
    %p416 = scmp.ne.s32.totalorder %s399, %s415
    %p417 = scmp.eq.s32.totalorder %s35, 0
    %p418 = por %p416, %p417
    %s419 = smul.u32 %s29, 16
    %s420 = sadd.s32 %s419, 12
    %s421 = sld [smem:[#allocation3 + %s420]]
    %s422 = smul.u32 %s36, 16
    %s423 = sadd.s32 %s422, 12
    %s424 = sld [smem:[#allocation3 + %s423]]
    %s425 = ssub.s32 %s421, %s424
    %p426 = scmp.eq.s32.totalorder %s425, 0
    %s428 = sadd.s32 %s427, 1
    %s429 = scalar_select %p426, %s427, %s428
    %p432 = pneg %p426
    %p433 = scmp.eq.s32.totalorder %s29, 1
    %p434 = por %p432, %p433
    %p435 = scmp.ne.s32.totalorder %s427, %s430
    %p436 = scmp.eq.s32.totalorder %s29, 0
    %p437 = por %p435, %p436
    %p438 = scmp.ne.s32.totalorder %s427, %s430
    %p439 = scmp.eq.s32.totalorder %s34, 1
    %p440 = por %p438, %p439
    %p441 = scmp.ne.s32.totalorder %s430, %s431
    %p442 = scmp.eq.s32.totalorder %s34, 0
    %p443 = por %p441, %p442
    %p444 = scmp.ne.s32.totalorder %s430, %s431
    %p445 = scmp.eq.s32.totalorder %s35, 1
    %p446 = por %p444, %p445
    %p448 = scmp.ne.s32.totalorder %s431, %s447
    %p449 = scmp.eq.s32.totalorder %s35, 0
    %p450 = por %p448, %p449
    %s451 = smul.u32 %s29, 16
    %s452 = sadd.s32 %s451, 13
    %s453 = sld [smem:[#allocation3 + %s452]]
    %s454 = smul.u32 %s36, 16
    %s455 = sadd.s32 %s454, 13
    %s456 = sld [smem:[#allocation3 + %s455]]
    %s457 = ssub.s32 %s453, %s456
    %p458 = scmp.eq.s32.totalorder %s457, 0
    %s460 = sadd.s32 %s459, 1
    %s461 = scalar_select %p458, %s459, %s460
    %p464 = pneg %p458
    %p465 = scmp.eq.s32.totalorder %s29, 1
    %p466 = por %p464, %p465
    %p467 = scmp.ne.s32.totalorder %s459, %s462
    %p468 = scmp.eq.s32.totalorder %s29, 0
    %p469 = por %p467, %p468
    %p470 = scmp.ne.s32.totalorder %s459, %s462
    %p471 = scmp.eq.s32.totalorder %s34, 1
    %p472 = por %p470, %p471
    %p473 = scmp.ne.s32.totalorder %s462, %s463
    %p474 = scmp.eq.s32.totalorder %s34, 0
    %p475 = por %p473, %p474
    %p476 = scmp.ne.s32.totalorder %s462, %s463
    %p477 = scmp.eq.s32.totalorder %s35, 1
    %p478 = por %p476, %p477
    %p480 = scmp.ne.s32.totalorder %s463, %s479
    %p481 = scmp.eq.s32.totalorder %s35, 0
    %p482 = por %p480, %p481
    %s483 = smul.u32 %s29, 16
    %s484 = sadd.s32 %s483, 14
    %s485 = sld [smem:[#allocation3 + %s484]]
    %s486 = smul.u32 %s36, 16
    %s487 = sadd.s32 %s486, 14
    %s488 = sld [smem:[#allocation3 + %s487]]
    %s489 = ssub.s32 %s485, %s488
    %p490 = scmp.eq.s32.totalorder %s489, 0
    %s492 = sadd.s32 %s491, 1
    %s493 = scalar_select %p490, %s491, %s492
    %p496 = pneg %p490
    %p497 = scmp.eq.s32.totalorder %s29, 1
    %p498 = por %p496, %p497
    %p499 = scmp.ne.s32.totalorder %s491, %s494
    %p500 = scmp.eq.s32.totalorder %s29, 0
    %p501 = por %p499, %p500
    %p502 = scmp.ne.s32.totalorder %s491, %s494
    %p503 = scmp.eq.s32.totalorder %s34, 1
    %p504 = por %p502, %p503
    %p505 = scmp.ne.s32.totalorder %s494, %s495
    %p506 = scmp.eq.s32.totalorder %s34, 0
    %p507 = por %p505, %p506
    %p508 = scmp.ne.s32.totalorder %s494, %s495
    %p509 = scmp.eq.s32.totalorder %s35, 1
    %p510 = por %p508, %p509
    %p512 = scmp.ne.s32.totalorder %s495, %s511
    %p513 = scmp.eq.s32.totalorder %s35, 0
    %p514 = por %p512, %p513
    %s515 = smul.u32 %s29, 16
    %s516 = sadd.s32 %s515, 15
    %s517 = sld [smem:[#allocation3 + %s516]]
    %s518 = smul.u32 %s36, 16
    %s519 = sadd.s32 %s518, 15
    %s520 = sld [smem:[#allocation3 + %s519]]
    %s521 = ssub.s32 %s517, %s520
    %p522 = scmp.eq.s32.totalorder %s521, 0
    %s524 = sadd.s32 %s523, 1
    %s525 = scalar_select %p522, %s523, %s524
    %p528 = pneg %p522
    %p529 = scmp.eq.s32.totalorder %s29, 1
    %p530 = por %p528, %p529
    %p531 = scmp.ne.s32.totalorder %s523, %s526
    %p532 = scmp.eq.s32.totalorder %s29, 0
    %p533 = por %p531, %p532
    %p534 = scmp.ne.s32.totalorder %s523, %s526
    %p535 = scmp.eq.s32.totalorder %s34, 1
    %p536 = por %p534, %p535
    %p537 = scmp.ne.s32.totalorder %s526, %s527
    %p538 = scmp.eq.s32.totalorder %s34, 0
    %p539 = por %p537, %p538
    %p540 = scmp.ne.s32.totalorder %s526, %s527
    %p541 = scmp.eq.s32.totalorder %s35, 1
    %p542 = por %p540, %p541
    %p544 = scmp.ne.s32.totalorder %s527, %s543
    %p545 = scmp.eq.s32.totalorder %s35, 0
    %p546 = por %p544, %p545
    %s547 = ssub.s32 %s29, %s36
    %p548 = scmp.eq.s32.totalorder %s547, 0
    %s550 = sadd.s32 %s549, 1
    %s551 = scalar_select %p548, %s549, %s550
    %p554 = pneg %p548
    %p555 = scmp.eq.s32.totalorder %s29, 1
    %p556 = por %p554, %p555
    %p557 = scmp.ne.s32.totalorder %s549, %s552
    %p558 = scmp.eq.s32.totalorder %s29, 0
    %p559 = por %p557, %p558
    %p560 = scmp.ne.s32.totalorder %s549, %s552
    %p561 = scmp.eq.s32.totalorder %s34, 1
    %p562 = por %p560, %p561
    %p563 = scmp.ne.s32.totalorder %s552, %s553
    %p564 = scmp.eq.s32.totalorder %s34, 0
    %p565 = por %p563, %p564
    %p566 = scmp.ne.s32.totalorder %s552, %s553
    %p567 = scmp.eq.s32.totalorder %s35, 1
    %p568 = por %p566, %p567
    %p570 = scmp.ne.s32.totalorder %s553, %s569
    %p571 = scmp.eq.s32.totalorder %s35, 0
    %p572 = por %p570, %p571
    %p573 = scmp.le.s32.totalorder 1, %s29
    %p574 = scmp.lt.s32.totalorder %s29, 3
    %p575 = pnand %p573, %p574
    %p576 = pneg %p575
    // Predicated region
    $region9: #{tpu_custom_call.1} parent=5 // pred_check
      _
    $region10: #{tpu_custom_call.1} parent=5 // pred_check_branch
      %578 = sbr.rel (%p575) target = $region12
    $region11: #{tpu_custom_call.1} parent=5 // pred_region
      %s579 = ssub.s32 %s29, 1
    $region12: #{tpu_custom_call.1} parent=5 // pred_fallthru
      _
    %p580 = scmp.lt.s32.totalorder %s29, 2
    // Predicated region
    $region13: #{tpu_custom_call.1} parent=5 // pred_check
      %p581 = pneg %p580
    $region14: #{tpu_custom_call.1} parent=5 // pred_check_branch
      %583 = sbr.rel (%p581) target = $region16
    $region15: #{tpu_custom_call.1} parent=5 // pred_region
      // Predicated region
      $region17: #{tpu_custom_call.1} parent=15 // pred_check
        %p584 = pneg %p53
      $region18: #{tpu_custom_call.1} parent=15 // pred_check_branch
        %586 = sbr.rel (%p584) target = $region20
      $region19: #{tpu_custom_call.1} parent=15 // pred_region
        %s587 = smul.u32 %s29, 16
        %s588 = sld [smem:[#allocation3 + %s587]]
        %p589 = scmp.lt.s32.totalorder %s588, 17
        %s590 = scalar_select %p589, %s588, 17
        %s591 = scalar_lea.vmem %s1, %s590
        %s592 = smul.u32 %s29, 16
        %s593 = sld [smem:[#allocation3 + %s592]]
      $region20: #{tpu_custom_call.1} parent=15 // pred_fallthru
        _
      // Predicated region
      $region21: #{tpu_custom_call.1} parent=15 // pred_check
        %p594 = pneg %p85
      $region22: #{tpu_custom_call.1} parent=15 // pred_check_branch
        %596 = sbr.rel (%p594) target = $region24
      $region23: #{tpu_custom_call.1} parent=15 // pred_region
        %s597 = smul.u32 %s29, 16
        %s598 = sadd.s32 %s597, 1
        %s599 = sld [smem:[#allocation3 + %s598]]
        %p600 = scmp.lt.s32.totalorder %s599, 17
        %s601 = scalar_select %p600, %s599, 17
        %s602 = scalar_lea.vmem %s2, %s601
        %s603 = smul.u32 %s29, 16
        %s604 = sadd.s32 %s603, 1
        %s605 = sld [smem:[#allocation3 + %s604]]
      $region24: #{tpu_custom_call.1} parent=15 // pred_fallthru
        _
      // Predicated region
      $region25: #{tpu_custom_call.1} parent=15 // pred_check
        %p606 = pneg %p117
      $region26: #{tpu_custom_call.1} parent=15 // pred_check_branch
        %608 = sbr.rel (%p606) target = $region28
      $region27: #{tpu_custom_call.1} parent=15 // pred_region
        %s609 = smul.u32 %s29, 16
        %s610 = sadd.s32 %s609, 2
        %s611 = sld [smem:[#allocation3 + %s610]]
        %p612 = scmp.lt.s32.totalorder %s611, 17
        %s613 = scalar_select %p612, %s611, 17
        %s614 = scalar_lea.vmem %s3, %s613
        %s615 = smul.u32 %s29, 16
        %s616 = sadd.s32 %s615, 2
        %s617 = sld [smem:[#allocation3 + %s616]]
      $region28: #{tpu_custom_call.1} parent=15 // pred_fallthru
        _
      // Predicated region
      $region29: #{tpu_custom_call.1} parent=15 // pred_check
        %p618 = pneg %p149
      $region30: #{tpu_custom_call.1} parent=15 // pred_check_branch
        %620 = sbr.rel (%p618) target = $region32
      $region31: #{tpu_custom_call.1} parent=15 // pred_region
        %s621 = smul.u32 %s29, 16
        %s622 = sadd.s32 %s621, 3
        %s623 = sld [smem:[#allocation3 + %s622]]
        %p624 = scmp.lt.s32.totalorder %s623, 17
        %s625 = scalar_select %p624, %s623, 17
        %s626 = scalar_lea.vmem %s4, %s625
        %s627 = smul.u32 %s29, 16
        %s628 = sadd.s32 %s627, 3
        %s629 = sld [smem:[#allocation3 + %s628]]
      $region32: #{tpu_custom_call.1} parent=15 // pred_fallthru
        _
      // Predicated region
      $region33: #{tpu_custom_call.1} parent=15 // pred_check
        %p630 = pneg %p181
      $region34: #{tpu_custom_call.1} parent=15 // pred_check_branch
        %632 = sbr.rel (%p630) target = $region36
      $region35: #{tpu_custom_call.1} parent=15 // pred_region
        %s633 = smul.u32 %s29, 16
        %s634 = sadd.s32 %s633, 4
        %s635 = sld [smem:[#allocation3 + %s634]]
        %p636 = scmp.lt.s32.totalorder %s635, 17
        %s637 = scalar_select %p636, %s635, 17
        %s638 = scalar_lea.vmem %s5, %s637
        %s639 = smul.u32 %s29, 16
        %s640 = sadd.s32 %s639, 4
        %s641 = sld [smem:[#allocation3 + %s640]]
      $region36: #{tpu_custom_call.1} parent=15 // pred_fallthru
        _
      // Predicated region
      $region37: #{tpu_custom_call.1} parent=15 // pred_check
        %p642 = pneg %p213
      $region38: #{tpu_custom_call.1} parent=15 // pred_check_branch
        %644 = sbr.rel (%p642) target = $region40
      $region39: #{tpu_custom_call.1} parent=15 // pred_region
        %s645 = smul.u32 %s29, 16
        %s646 = sadd.s32 %s645, 5
        %s647 = sld [smem:[#allocation3 + %s646]]
        %p648 = scmp.lt.s32.totalorder %s647, 17
        %s649 = scalar_select %p648, %s647, 17
        %s650 = scalar_lea.vmem %s6, %s649
        %s651 = smul.u32 %s29, 16
        %s652 = sadd.s32 %s651, 5
        %s653 = sld [smem:[#allocation3 + %s652]]
      $region40: #{tpu_custom_call.1} parent=15 // pred_fallthru
        _
      // Predicated region
      $region41: #{tpu_custom_call.1} parent=15 // pred_check
        %p654 = pneg %p245
      $region42: #{tpu_custom_call.1} parent=15 // pred_check_branch
        %656 = sbr.rel (%p654) target = $region44
      $region43: #{tpu_custom_call.1} parent=15 // pred_region
        %s657 = smul.u32 %s29, 16
        %s658 = sadd.s32 %s657, 6
        %s659 = sld [smem:[#allocation3 + %s658]]
        %p660 = scmp.lt.s32.totalorder %s659, 17
        %s661 = scalar_select %p660, %s659, 17
        %s662 = scalar_lea.vmem %s7, %s661
        %s663 = smul.u32 %s29, 16
        %s664 = sadd.s32 %s663, 6
        %s665 = sld [smem:[#allocation3 + %s664]]
      $region44: #{tpu_custom_call.1} parent=15 // pred_fallthru
        _
      // Predicated region
      $region45: #{tpu_custom_call.1} parent=15 // pred_check
        %p666 = pneg %p277
      $region46: #{tpu_custom_call.1} parent=15 // pred_check_branch
        %668 = sbr.rel (%p666) target = $region48
      $region47: #{tpu_custom_call.1} parent=15 // pred_region
        %s669 = smul.u32 %s29, 16
        %s670 = sadd.s32 %s669, 7
        %s671 = sld [smem:[#allocation3 + %s670]]
        %p672 = scmp.lt.s32.totalorder %s671, 17
        %s673 = scalar_select %p672, %s671, 17
        %s674 = scalar_lea.vmem %s8, %s673
        %s675 = smul.u32 %s29, 16
        %s676 = sadd.s32 %s675, 7
        %s677 = sld [smem:[#allocation3 + %s676]]
      $region48: #{tpu_custom_call.1} parent=15 // pred_fallthru
        _
      // Predicated region
      $region49: #{tpu_custom_call.1} parent=15 // pred_check
        %p678 = pneg %p309
      $region50: #{tpu_custom_call.1} parent=15 // pred_check_branch
        %680 = sbr.rel (%p678) target = $region52
      $region51: #{tpu_custom_call.1} parent=15 // pred_region
        %s681 = smul.u32 %s29, 16
        %s682 = sadd.s32 %s681, 8
        %s683 = sld [smem:[#allocation3 + %s682]]
        %p684 = scmp.lt.s32.totalorder %s683, 17
        %s685 = scalar_select %p684, %s683, 17
        %s686 = scalar_lea.vmem %s9, %s685
        %s687 = smul.u32 %s29, 16
        %s688 = sadd.s32 %s687, 8
        %s689 = sld [smem:[#allocation3 + %s688]]
      $region52: #{tpu_custom_call.1} parent=15 // pred_fallthru
        _
      // Predicated region
      $region53: #{tpu_custom_call.1} parent=15 // pred_check
        %p690 = pneg %p341
      $region54: #{tpu_custom_call.1} parent=15 // pred_check_branch
        %692 = sbr.rel (%p690) target = $region56
      $region55: #{tpu_custom_call.1} parent=15 // pred_region
        %s693 = smul.u32 %s29, 16
        %s694 = sadd.s32 %s693, 9
        %s695 = sld [smem:[#allocation3 + %s694]]
        %p696 = scmp.lt.s32.totalorder %s695, 17
        %s697 = scalar_select %p696, %s695, 17
        %s698 = scalar_lea.vmem %s10, %s697
        %s699 = smul.u32 %s29, 16
        %s700 = sadd.s32 %s699, 9
        %s701 = sld [smem:[#allocation3 + %s700]]
      $region56: #{tpu_custom_call.1} parent=15 // pred_fallthru
        _
      // Predicated region
      $region57: #{tpu_custom_call.1} parent=15 // pred_check
        %p702 = pneg %p373
      $region58: #{tpu_custom_call.1} parent=15 // pred_check_branch
        %704 = sbr.rel (%p702) target = $region60
      $region59: #{tpu_custom_call.1} parent=15 // pred_region
        %s705 = smul.u32 %s29, 16
        %s706 = sadd.s32 %s705, 10
        %s707 = sld [smem:[#allocation3 + %s706]]
        %p708 = scmp.lt.s32.totalorder %s707, 17
        %s709 = scalar_select %p708, %s707, 17
        %s710 = scalar_lea.vmem %s11, %s709
        %s711 = smul.u32 %s29, 16
        %s712 = sadd.s32 %s711, 10
        %s713 = sld [smem:[#allocation3 + %s712]]
      $region60: #{tpu_custom_call.1} parent=15 // pred_fallthru
        _
      // Predicated region
      $region61: #{tpu_custom_call.1} parent=15 // pred_check
        %p714 = pneg %p405
      $region62: #{tpu_custom_call.1} parent=15 // pred_check_branch
        %716 = sbr.rel (%p714) target = $region64
      $region63: #{tpu_custom_call.1} parent=15 // pred_region
        %s717 = smul.u32 %s29, 16
        %s718 = sadd.s32 %s717, 11
        %s719 = sld [smem:[#allocation3 + %s718]]
        %p720 = scmp.lt.s32.totalorder %s719, 17
        %s721 = scalar_select %p720, %s719, 17
        %s722 = scalar_lea.vmem %s12, %s721
        %s723 = smul.u32 %s29, 16
        %s724 = sadd.s32 %s723, 11
        %s725 = sld [smem:[#allocation3 + %s724]]
      $region64: #{tpu_custom_call.1} parent=15 // pred_fallthru
        _
      // Predicated region
      $region65: #{tpu_custom_call.1} parent=15 // pred_check
        %p726 = pneg %p437
      $region66: #{tpu_custom_call.1} parent=15 // pred_check_branch
        %728 = sbr.rel (%p726) target = $region68
      $region67: #{tpu_custom_call.1} parent=15 // pred_region
        %s729 = smul.u32 %s29, 16
        %s730 = sadd.s32 %s729, 12
        %s731 = sld [smem:[#allocation3 + %s730]]
        %p732 = scmp.lt.s32.totalorder %s731, 17
        %s733 = scalar_select %p732, %s731, 17
        %s734 = scalar_lea.vmem %s13, %s733
        %s735 = smul.u32 %s29, 16
        %s736 = sadd.s32 %s735, 12
        %s737 = sld [smem:[#allocation3 + %s736]]
      $region68: #{tpu_custom_call.1} parent=15 // pred_fallthru
        _
      // Predicated region
      $region69: #{tpu_custom_call.1} parent=15 // pred_check
        %p738 = pneg %p469
      $region70: #{tpu_custom_call.1} parent=15 // pred_check_branch
        %740 = sbr.rel (%p738) target = $region72
      $region71: #{tpu_custom_call.1} parent=15 // pred_region
        %s741 = smul.u32 %s29, 16
        %s742 = sadd.s32 %s741, 13
        %s743 = sld [smem:[#allocation3 + %s742]]
        %p744 = scmp.lt.s32.totalorder %s743, 17
        %s745 = scalar_select %p744, %s743, 17
        %s746 = scalar_lea.vmem %s14, %s745
        %s747 = smul.u32 %s29, 16
        %s748 = sadd.s32 %s747, 13
        %s749 = sld [smem:[#allocation3 + %s748]]
      $region72: #{tpu_custom_call.1} parent=15 // pred_fallthru
        _
      // Predicated region
      $region73: #{tpu_custom_call.1} parent=15 // pred_check
        %p750 = pneg %p501
      $region74: #{tpu_custom_call.1} parent=15 // pred_check_branch
        %752 = sbr.rel (%p750) target = $region76
      $region75: #{tpu_custom_call.1} parent=15 // pred_region
        %s753 = smul.u32 %s29, 16
        %s754 = sadd.s32 %s753, 14
        %s755 = sld [smem:[#allocation3 + %s754]]
        %p756 = scmp.lt.s32.totalorder %s755, 17
        %s757 = scalar_select %p756, %s755, 17
        %s758 = scalar_lea.vmem %s15, %s757
        %s759 = smul.u32 %s29, 16
        %s760 = sadd.s32 %s759, 14
        %s761 = sld [smem:[#allocation3 + %s760]]
      $region76: #{tpu_custom_call.1} parent=15 // pred_fallthru
        _
      // Predicated region
      $region77: #{tpu_custom_call.1} parent=15 // pred_check
        %p762 = pneg %p533
      $region78: #{tpu_custom_call.1} parent=15 // pred_check_branch
        %764 = sbr.rel (%p762) target = $region80
      $region79: #{tpu_custom_call.1} parent=15 // pred_region
        %s765 = smul.u32 %s29, 16
        %s766 = sadd.s32 %s765, 15
        %s767 = sld [smem:[#allocation3 + %s766]]
        %p768 = scmp.lt.s32.totalorder %s767, 17
        %s769 = scalar_select %p768, %s767, 17
        %s770 = scalar_lea.vmem %s16, %s769
        %s771 = smul.u32 %s29, 16
        %s772 = sadd.s32 %s771, 15
        %s773 = sld [smem:[#allocation3 + %s772]]
      $region80: #{tpu_custom_call.1} parent=15 // pred_fallthru
        _
    $region16: #{tpu_custom_call.1} parent=5 // pred_fallthru
      _
    %p774 = scmp.le.s32.totalorder 1, %s29
    %p775 = scmp.lt.s32.totalorder %s29, 3
    %p776 = pnand %p774, %p775
    %p777 = pneg %p776
    // Predicated region
    $region81: #{tpu_custom_call.1} parent=5 // pred_check
      _
    $region82: #{tpu_custom_call.1} parent=5 // pred_check_branch
      %779 = sbr.rel (%p776) target = $region84
    $region83: #{tpu_custom_call.1} parent=5 // pred_region
      %s780 = ssub.s32 %s29, 1
      %s781 = smul.u32 %s34, 16
      %s782 = sld [smem:[#allocation3 + %s781]]
      %p783 = scmp.lt.s32.totalorder %s782, 17
      %s784 = scalar_select %p783, %s782, 17
      %s785 = scalar_lea.vmem %s1, %s784
      %p786 = pneg %p59
      %p787 = pneg %p56
      %s788 = smul.u32 %s34, 16
      %s789 = sadd.s32 %s788, 1
      %s790 = sld [smem:[#allocation3 + %s789]]
      %p791 = scmp.lt.s32.totalorder %s790, 17
      %s792 = scalar_select %p791, %s790, 17
      %s793 = scalar_lea.vmem %s2, %s792
      %p794 = pneg %p91
      %p795 = pneg %p88
      %s796 = smul.u32 %s34, 16
      %s797 = sadd.s32 %s796, 2
      %s798 = sld [smem:[#allocation3 + %s797]]
      %p799 = scmp.lt.s32.totalorder %s798, 17
      %s800 = scalar_select %p799, %s798, 17
      %s801 = scalar_lea.vmem %s3, %s800
      %p802 = pneg %p123
      %p803 = pneg %p120
      %s804 = smul.u32 %s34, 16
      %s805 = sadd.s32 %s804, 3
      %s806 = sld [smem:[#allocation3 + %s805]]
      %p807 = scmp.lt.s32.totalorder %s806, 17
      %s808 = scalar_select %p807, %s806, 17
      %s809 = scalar_lea.vmem %s4, %s808
      %p810 = pneg %p155
      %p811 = pneg %p152
      %s812 = smul.u32 %s34, 16
      %s813 = sadd.s32 %s812, 4
      %s814 = sld [smem:[#allocation3 + %s813]]
      %p815 = scmp.lt.s32.totalorder %s814, 17
      %s816 = scalar_select %p815, %s814, 17
      %s817 = scalar_lea.vmem %s5, %s816
      %p818 = pneg %p187
      %p819 = pneg %p184
      %s820 = smul.u32 %s34, 16
      %s821 = sadd.s32 %s820, 5
      %s822 = sld [smem:[#allocation3 + %s821]]
      %p823 = scmp.lt.s32.totalorder %s822, 17
      %s824 = scalar_select %p823, %s822, 17
      %s825 = scalar_lea.vmem %s6, %s824
      %p826 = pneg %p219
      %p827 = pneg %p216
      %s828 = smul.u32 %s34, 16
      %s829 = sadd.s32 %s828, 6
      %s830 = sld [smem:[#allocation3 + %s829]]
      %p831 = scmp.lt.s32.totalorder %s830, 17
      %s832 = scalar_select %p831, %s830, 17
      %s833 = scalar_lea.vmem %s7, %s832
      %p834 = pneg %p251
      %p835 = pneg %p248
      %s836 = smul.u32 %s34, 16
      %s837 = sadd.s32 %s836, 7
      %s838 = sld [smem:[#allocation3 + %s837]]
      %p839 = scmp.lt.s32.totalorder %s838, 17
      %s840 = scalar_select %p839, %s838, 17
      %s841 = scalar_lea.vmem %s8, %s840
      %p842 = pneg %p283
      %p843 = pneg %p280
      %s844 = smul.u32 %s34, 16
      %s845 = sadd.s32 %s844, 8
      %s846 = sld [smem:[#allocation3 + %s845]]
      %p847 = scmp.lt.s32.totalorder %s846, 17
      %s848 = scalar_select %p847, %s846, 17
      %s849 = scalar_lea.vmem %s9, %s848
      %p850 = pneg %p315
      %p851 = pneg %p312
      %s852 = smul.u32 %s34, 16
      %s853 = sadd.s32 %s852, 9
      %s854 = sld [smem:[#allocation3 + %s853]]
      %p855 = scmp.lt.s32.totalorder %s854, 17
      %s856 = scalar_select %p855, %s854, 17
      %s857 = scalar_lea.vmem %s10, %s856
      %p858 = pneg %p347
      %p859 = pneg %p344
      %s860 = smul.u32 %s34, 16
      %s861 = sadd.s32 %s860, 10
      %s862 = sld [smem:[#allocation3 + %s861]]
      %p863 = scmp.lt.s32.totalorder %s862, 17
      %s864 = scalar_select %p863, %s862, 17
      %s865 = scalar_lea.vmem %s11, %s864
      %p866 = pneg %p379
      %p867 = pneg %p376
      %s868 = smul.u32 %s34, 16
      %s869 = sadd.s32 %s868, 11
      %s870 = sld [smem:[#allocation3 + %s869]]
      %p871 = scmp.lt.s32.totalorder %s870, 17
      %s872 = scalar_select %p871, %s870, 17
      %s873 = scalar_lea.vmem %s12, %s872
      %p874 = pneg %p411
      %p875 = pneg %p408
      %s876 = smul.u32 %s34, 16
      %s877 = sadd.s32 %s876, 12
      %s878 = sld [smem:[#allocation3 + %s877]]
      %p879 = scmp.lt.s32.totalorder %s878, 17
      %s880 = scalar_select %p879, %s878, 17
      %s881 = scalar_lea.vmem %s13, %s880
      %p882 = pneg %p443
      %p883 = pneg %p440
      %s884 = smul.u32 %s34, 16
      %s885 = sadd.s32 %s884, 13
      %s886 = sld [smem:[#allocation3 + %s885]]
      %p887 = scmp.lt.s32.totalorder %s886, 17
      %s888 = scalar_select %p887, %s886, 17
      %s889 = scalar_lea.vmem %s14, %s888
      %p890 = pneg %p475
      %p891 = pneg %p472
      %s892 = smul.u32 %s34, 16
      %s893 = sadd.s32 %s892, 14
      %s894 = sld [smem:[#allocation3 + %s893]]
      %p895 = scmp.lt.s32.totalorder %s894, 17
      %s896 = scalar_select %p895, %s894, 17
      %s897 = scalar_lea.vmem %s15, %s896
      %p898 = pneg %p507
      %p899 = pneg %p504
      %s900 = smul.u32 %s34, 16
      %s901 = sadd.s32 %s900, 15
      %s902 = sld [smem:[#allocation3 + %s901]]
      %p903 = scmp.lt.s32.totalorder %s902, 17
      %s904 = scalar_select %p903, %s902, 17
      %s905 = scalar_lea.vmem %s16, %s904
      %p906 = pneg %p539
      %p907 = pneg %p536
      %p908 = pneg %p565
      %p909 = pneg %p562
      %s910 = smul.u32 2, %s34
      %p911 = scmp.lt.s32.totalorder %s910, 3
      %s912 = scalar_select %p911, %s910, 3
      %s913 = smul.addr %s912, 8
      %s914 = scalar_lea.vmem %s17, %s913
      %s915 = smul.u32 %s34, 16
      %s916 = sld [smem:[#allocation3 + %s915]]
      %p917 = scmp.lt.s32.totalorder %s916, 17
      %s918 = scalar_select %p917, %s916, 17
      %s919 = scalar_lea.vmem %s1, %s918
      %s920 = smul.u32 %s34, 16
      %s921 = sld [smem:[#allocation3 + %s920]]
      %s922 = smul.u32 %s34, 16
      %s923 = sadd.s32 %s922, 1
      %s924 = sld [smem:[#allocation3 + %s923]]
      %p925 = scmp.lt.s32.totalorder %s924, 17
      %s926 = scalar_select %p925, %s924, 17
      %s927 = scalar_lea.vmem %s2, %s926
      %s928 = smul.u32 %s34, 16
      %s929 = sadd.s32 %s928, 1
      %s930 = sld [smem:[#allocation3 + %s929]]
      %s931 = smul.u32 %s34, 16
      %s932 = sadd.s32 %s931, 2
      %s933 = sld [smem:[#allocation3 + %s932]]
      %p934 = scmp.lt.s32.totalorder %s933, 17
      %s935 = scalar_select %p934, %s933, 17
      %s936 = scalar_lea.vmem %s3, %s935
      %s937 = smul.u32 %s34, 16
      %s938 = sadd.s32 %s937, 2
      %s939 = sld [smem:[#allocation3 + %s938]]
      %s940 = smul.u32 %s34, 16
      %s941 = sadd.s32 %s940, 3
      %s942 = sld [smem:[#allocation3 + %s941]]
      %p943 = scmp.lt.s32.totalorder %s942, 17
      %s944 = scalar_select %p943, %s942, 17
      %s945 = scalar_lea.vmem %s4, %s944
      %s946 = smul.u32 %s34, 16
      %s947 = sadd.s32 %s946, 3
      %s948 = sld [smem:[#allocation3 + %s947]]
      %s949 = smul.u32 %s34, 16
      %s950 = sadd.s32 %s949, 4
      %s951 = sld [smem:[#allocation3 + %s950]]
      %p952 = scmp.lt.s32.totalorder %s951, 17
      %s953 = scalar_select %p952, %s951, 17
      %s954 = scalar_lea.vmem %s5, %s953
      %s955 = smul.u32 %s34, 16
      %s956 = sadd.s32 %s955, 4
      %s957 = sld [smem:[#allocation3 + %s956]]
      %s958 = smul.u32 %s34, 16
      %s959 = sadd.s32 %s958, 5
      %s960 = sld [smem:[#allocation3 + %s959]]
      %p961 = scmp.lt.s32.totalorder %s960, 17
      %s962 = scalar_select %p961, %s960, 17
      %s963 = scalar_lea.vmem %s6, %s962
      %s964 = smul.u32 %s34, 16
      %s965 = sadd.s32 %s964, 5
      %s966 = sld [smem:[#allocation3 + %s965]]
      %s967 = smul.u32 %s34, 16
      %s968 = sadd.s32 %s967, 6
      %s969 = sld [smem:[#allocation3 + %s968]]
      %p970 = scmp.lt.s32.totalorder %s969, 17
      %s971 = scalar_select %p970, %s969, 17
      %s972 = scalar_lea.vmem %s7, %s971
      %s973 = smul.u32 %s34, 16
      %s974 = sadd.s32 %s973, 6
      %s975 = sld [smem:[#allocation3 + %s974]]
      %s976 = smul.u32 %s34, 16
      %s977 = sadd.s32 %s976, 7
      %s978 = sld [smem:[#allocation3 + %s977]]
      %p979 = scmp.lt.s32.totalorder %s978, 17
      %s980 = scalar_select %p979, %s978, 17
      %s981 = scalar_lea.vmem %s8, %s980
      %s982 = smul.u32 %s34, 16
      %s983 = sadd.s32 %s982, 7
      %s984 = sld [smem:[#allocation3 + %s983]]
      %s985 = smul.u32 %s34, 16
      %s986 = sadd.s32 %s985, 8
      %s987 = sld [smem:[#allocation3 + %s986]]
      %p988 = scmp.lt.s32.totalorder %s987, 17
      %s989 = scalar_select %p988, %s987, 17
      %s990 = scalar_lea.vmem %s9, %s989
      %s991 = smul.u32 %s34, 16
      %s992 = sadd.s32 %s991, 8
      %s993 = sld [smem:[#allocation3 + %s992]]
      %s994 = smul.u32 %s34, 16
      %s995 = sadd.s32 %s994, 9
      %s996 = sld [smem:[#allocation3 + %s995]]
      %p997 = scmp.lt.s32.totalorder %s996, 17
      %s998 = scalar_select %p997, %s996, 17
      %s999 = scalar_lea.vmem %s10, %s998
      %s1000 = smul.u32 %s34, 16
      %s1001 = sadd.s32 %s1000, 9
      %s1002 = sld [smem:[#allocation3 + %s1001]]
      %s1003 = smul.u32 %s34, 16
      %s1004 = sadd.s32 %s1003, 10
      %s1005 = sld [smem:[#allocation3 + %s1004]]
      %p1006 = scmp.lt.s32.totalorder %s1005, 17
      %s1007 = scalar_select %p1006, %s1005, 17
      %s1008 = scalar_lea.vmem %s11, %s1007
      %s1009 = smul.u32 %s34, 16
      %s1010 = sadd.s32 %s1009, 10
      %s1011 = sld [smem:[#allocation3 + %s1010]]
      %s1012 = smul.u32 %s34, 16
      %s1013 = sadd.s32 %s1012, 11
      %s1014 = sld [smem:[#allocation3 + %s1013]]
      %p1015 = scmp.lt.s32.totalorder %s1014, 17
      %s1016 = scalar_select %p1015, %s1014, 17
      %s1017 = scalar_lea.vmem %s12, %s1016
      %s1018 = smul.u32 %s34, 16
      %s1019 = sadd.s32 %s1018, 11
      %s1020 = sld [smem:[#allocation3 + %s1019]]
      %s1021 = smul.u32 %s34, 16
      %s1022 = sadd.s32 %s1021, 12
      %s1023 = sld [smem:[#allocation3 + %s1022]]
      %p1024 = scmp.lt.s32.totalorder %s1023, 17
      %s1025 = scalar_select %p1024, %s1023, 17
      %s1026 = scalar_lea.vmem %s13, %s1025
      %s1027 = smul.u32 %s34, 16
      %s1028 = sadd.s32 %s1027, 12
      %s1029 = sld [smem:[#allocation3 + %s1028]]
      %s1030 = smul.u32 %s34, 16
      %s1031 = sadd.s32 %s1030, 13
      %s1032 = sld [smem:[#allocation3 + %s1031]]
      %p1033 = scmp.lt.s32.totalorder %s1032, 17
      %s1034 = scalar_select %p1033, %s1032, 17
      %s1035 = scalar_lea.vmem %s14, %s1034
      %s1036 = smul.u32 %s34, 16
      %s1037 = sadd.s32 %s1036, 13
      %s1038 = sld [smem:[#allocation3 + %s1037]]
      %s1039 = smul.u32 %s34, 16
      %s1040 = sadd.s32 %s1039, 14
      %s1041 = sld [smem:[#allocation3 + %s1040]]
      %p1042 = scmp.lt.s32.totalorder %s1041, 17
      %s1043 = scalar_select %p1042, %s1041, 17
      %s1044 = scalar_lea.vmem %s15, %s1043
      %s1045 = smul.u32 %s34, 16
      %s1046 = sadd.s32 %s1045, 14
      %s1047 = sld [smem:[#allocation3 + %s1046]]
      %s1048 = smul.u32 %s34, 16
      %s1049 = sadd.s32 %s1048, 15
      %s1050 = sld [smem:[#allocation3 + %s1049]]
      %p1051 = scmp.lt.s32.totalorder %s1050, 17
      %s1052 = scalar_select %p1051, %s1050, 17
      %s1053 = scalar_lea.vmem %s16, %s1052
      %s1054 = smul.u32 %s34, 16
      %s1055 = sadd.s32 %s1054, 15
      %s1056 = sld [smem:[#allocation3 + %s1055]]
      %s1057 = smul.u32 2, %s34
      %p1058 = scmp.lt.s32.totalorder %s1057, 3
      %s1059 = scalar_select %p1058, %s1057, 3
      %s1060 = smul.addr %s1059, 8
      %s1061 = scalar_lea.vmem %s17, %s1060
      %s1062 = smul.u32 2, %s34
      %v1063 = vld [vmem:[%s919] sm:$0x1]
      %vm1064 = vcmask 122880
      %1065 = vst.msk [vmem:[%s1061] sm:$0x1] %vm1064, %v1063
      %v1066 = vld [vmem:[%s927] sm:$0x1]
      %1067 = vst.msk [vmem:[%s1061 + $0x1] sm:$0x1] %vm1064, %v1066
      %v1068 = vld [vmem:[%s936] sm:$0x1]
      %1069 = vst.msk [vmem:[%s1061 + $0x2] sm:$0x1] %vm1064, %v1068
      %v1070 = vld [vmem:[%s945] sm:$0x1]
      %1071 = vst.msk [vmem:[%s1061 + $0x3] sm:$0x1] %vm1064, %v1070
      %v1072 = vld [vmem:[%s954] sm:$0x1]
      %1073 = vst.msk [vmem:[%s1061 + $0x4] sm:$0x1] %vm1064, %v1072
      %v1074 = vld [vmem:[%s963] sm:$0x1]
      %1075 = vst.msk [vmem:[%s1061 + $0x5] sm:$0x1] %vm1064, %v1074
      %v1076 = vld [vmem:[%s972] sm:$0x1]
      %1077 = vst.msk [vmem:[%s1061 + $0x6] sm:$0x1] %vm1064, %v1076
      %v1078 = vld [vmem:[%s981] sm:$0x1]
      %1079 = vst.msk [vmem:[%s1061 + $0x7] sm:$0x1] %vm1064, %v1078
      %v1080 = vld [vmem:[%s990] sm:$0x1]
      %1081 = vst.msk [vmem:[%s1061 + $0x8] sm:$0x1] %vm1064, %v1080
      %v1082 = vld [vmem:[%s999] sm:$0x1]
      %1083 = vst.msk [vmem:[%s1061 + $0x9] sm:$0x1] %vm1064, %v1082
      %v1084 = vld [vmem:[%s1008] sm:$0x1]
      %1085 = vst.msk [vmem:[%s1061 + $0xa] sm:$0x1] %vm1064, %v1084
      %v1086 = vld [vmem:[%s1017] sm:$0x1]
      %1087 = vst.msk [vmem:[%s1061 + $0xb] sm:$0x1] %vm1064, %v1086
      %v1088 = vld [vmem:[%s1026] sm:$0x1]
      %1089 = vst.msk [vmem:[%s1061 + $0xc] sm:$0x1] %vm1064, %v1088
      %v1090 = vld [vmem:[%s1035] sm:$0x1]
      %1091 = vst.msk [vmem:[%s1061 + $0xd] sm:$0x1] %vm1064, %v1090
      %v1092 = vld [vmem:[%s1044] sm:$0x1]
      %1093 = vst.msk [vmem:[%s1061 + $0xe] sm:$0x1] %vm1064, %v1092
      %v1094 = vld [vmem:[%s1053] sm:$0x1]
      %1095 = vst.msk [vmem:[%s1061 + $0xf] sm:$0x1] %vm1064, %v1094
      %s1096 = smul.u32 2, %s34
      %p1097 = scmp.lt.s32.totalorder %s1096, 3
      %s1098 = scalar_select %p1097, %s1096, 3
      %s1099 = smul.addr %s1098, 8
      %s1100 = scalar_lea.vmem %s17, %s1099
      // Predicated region
      $region85: #{tpu_custom_call.1} parent=83 // pred_check
        %p1101 = pneg %p562
      $region86: #{tpu_custom_call.1} parent=83 // pred_check_branch
        %1103 = sbr.rel (%p1101) target = $region88
      $region87: #{tpu_custom_call.1} parent=83 // pred_region
        %s1104 = smul.u32 2, %s34
      $region88: #{tpu_custom_call.1} parent=83 // pred_fallthru
        _
    $region84: #{tpu_custom_call.1} parent=5 // pred_fallthru
      _
    %p1105 = scmp.le.s32.totalorder 2, %s29
    // Predicated region
    $region89: #{tpu_custom_call.1} parent=5 // pred_check
      %p1106 = pneg %p1105
    $region90: #{tpu_custom_call.1} parent=5 // pred_check_branch
      %1108 = sbr.rel (%p1106) target = $region92
    $region91: #{tpu_custom_call.1} parent=5 // pred_region
      %s1109 = ssub.s32 %s29, 2
      // Predicated region
      $region93: #{tpu_custom_call.1} parent=91 // pred_check
        %p1110 = pneg %p568
      $region94: #{tpu_custom_call.1} parent=91 // pred_check_branch
        %1112 = sbr.rel (%p1110) target = $region96
      $region95: #{tpu_custom_call.1} parent=91 // pred_region
        %s1113 = smul.u32 2, %s35
        %p1114 = scmp.lt.s32.totalorder %s1113, 3
        %s1115 = scalar_select %p1114, %s1113, 3
        %s1116 = smul.addr %s1115, 8
        %s1117 = scalar_lea.vmem %s17, %s1116
      $region96: #{tpu_custom_call.1} parent=91 // pred_fallthru
        _
    $region92: #{tpu_custom_call.1} parent=5 // pred_fallthru
      _
  $region6: #{tpu_custom_call.1} parent=0 // loop_footer
    %s33 = sadd.s32 1, %s29
  $region7: #{tpu_custom_call.1} parent=0 // loop_footer_branch
    %28 = sbr.rel target = $region3
  $region8: #{tpu_custom_call.1} parent=0 // loop_exit
    _

</llo_original>
